<compile_context>
chip_gen: v7x
topology: tpu7x:2x2x1
jax: 0.10.0
libtpu: 0.0.40
codegen_flags: <defaults>
</compile_context>

<pallas_src>
import math
import functools

import jax
import jax.numpy as jnp
from jax.scipy.special import erf
from jax.experimental import pallas as pl
from jax.experimental.pallas import tpu as pltpu


def _encoder_layer_kernel(x_ref, mask_ref, wqkv_ref, wo_ref, w1_ref, b1_ref,
                          w2_ref, b2_ref, out_ref, *, head):
    bt, L, D = x_ref.shape
    d_k = D // head
    M = bt * L
    inv_sqrt_dk = 1.0 / math.sqrt(d_k)

    x = x_ref[...].astype(jnp.float32)            # (bt, L, D)
    x2 = x.reshape(M, D)                          # merge batch+seq (free reshape)

    # ---- fused QKV projection: one (M, D) @ (D, 3D) MXU matmul, bf16 in / f32 acc
    qkv = jnp.dot(x2.astype(jnp.bfloat16), wqkv_ref[...],
                  preferred_element_type=jnp.float32)            # (M, 3D) f32
    qkv3 = qkv.astype(jnp.bfloat16).reshape(bt, L, 3 * D)        # (bt, L, 3D)

    def split_heads(base):
        parts = [qkv3[:, :, base + h * d_k: base + (h + 1) * d_k]  # (bt, L, d_k)
                 for h in range(head)]
        return jnp.stack(parts, axis=1).reshape(bt * head, L, d_k)

    qh = split_heads(0)          # (bt*H, L, d_k) bf16
    kh = split_heads(D)
    vh = split_heads(2 * D)

    # ---- scores for all (batch, head) pairs in one batched matmul
    scores = jnp.einsum('bqd,bkd->bqk', qh, kh,
                        preferred_element_type=jnp.float32) * inv_sqrt_dk  # (bt*H, L, L)

    # additive mask bias computed once per block, broadcast over heads
    bias = jnp.where(mask_ref[...] != 0, jnp.float32(-1e9), jnp.float32(0.0))  # (bt, L, L)
    bias = jnp.broadcast_to(bias[:, None], (bt, head, L, L)).reshape(bt * head, L, L)
    scores = scores + bias

    # ---- batched masked softmax (f32)
    scores = scores - jnp.max(scores, axis=-1, keepdims=True)
    p = jnp.exp(scores)
    attn = p * pl.reciprocal(jnp.sum(p, axis=-1, keepdims=True), approx=True)

    # ---- context (batched) and fused output projection
    ctx = jnp.einsum('bqk,bkd->bqd', attn.astype(jnp.bfloat16), vh,
                     preferred_element_type=jnp.float32)         # (bt*H, L, d_k)
    ctx = ctx.reshape(bt, head, L, d_k)
    ctx_cat = jnp.concatenate(
        [ctx[:, h].reshape(M, d_k) for h in range(head)], axis=-1)   # (M, D)
    attn_out = jnp.dot(ctx_cat.astype(jnp.bfloat16), wo_ref[...],
                       preferred_element_type=jnp.float32)       # (M, D)

    # ---- residual + LayerNorm (fresh nn.LayerNorm => gamma=1, beta=0, eps=1e-5)
    y = attn_out + x2
    mu = jnp.mean(y, axis=-1, keepdims=True)
    var = jnp.mean((y - mu) * (y - mu), axis=-1, keepdims=True)
    yn = (y - mu) * jax.lax.rsqrt(var + 1e-5)

    # ---- position-wise FFN: fc2(gelu(fc1(x))), exact erf-gelu, f32 elementwise
    h1 = jnp.dot(yn.astype(jnp.bfloat16), w1_ref[...],
                 preferred_element_type=jnp.float32) + b1_ref[...]
    g = h1 * 0.5 * (1.0 + erf(h1 * (1.0 / math.sqrt(2.0))))
    out = jnp.dot(g.astype(jnp.bfloat16), w2_ref[...],
                  preferred_element_type=jnp.float32) + b2_ref[...]

    out_ref[...] = out.reshape(bt, L, D).astype(out_ref.dtype)


def _pick_batch_tile(B, max_bt):
    """Largest divisor of B <= max_bt, but keep >= 2 grid steps when B >= 2
    (so both TensorCores get work on megacore / v7x parts)."""
    best = 1
    for c in range(1, min(B, max_bt) + 1):
        if B % c == 0:
            best = c
    if B >= 2 and B // best < 2:
        for c in range(best - 1, 0, -1):
            if B % c == 0 and B // c >= 2:
                return c
    return best


def encoder_layer(x, mask, params, *, head, batch_block=64):
    """x: (B, L, D) f32, mask: (B, L, L) int/bool (nonzero == masked)."""
    B, L, D = x.shape
    assert D % head == 0
    d_ff = 4 * D
    wq, wk, wv, wo, w1, b1, w2, b2 = params

    bt = _pick_batch_tile(B, batch_block)
    grid = (B // bt,)

    # fused QKV weight + bf16-cast matmul operands (f32 accumulation in-kernel)
    wqkv = jnp.concatenate([wq, wk, wv], axis=1).astype(jnp.bfloat16)   # (D, 3D)
    wo_b = wo.astype(jnp.bfloat16)                                      # (D, D)
    w1_b = w1.astype(jnp.bfloat16)                                      # (D, d_ff)
    w2_b = w2.astype(jnp.bfloat16)                                      # (d_ff, D)
    b1_2d = b1.reshape(1, d_ff).astype(jnp.float32)
    b2_2d = b2.reshape(1, D).astype(jnp.float32)
    mask_i32 = mask.astype(jnp.int32)
    # TODO(synk): lane-dense (bt, L*D) output slab and (B, L) key-padding mask were
    # skipped to avoid minor-dim reshape lowering risk / to keep the module's
    # general (B, L, L) mask semantics.

    def full_spec(shape):
        return pl.BlockSpec(shape, lambda b: (0,) * len(shape))

    kernel = functools.partial(_encoder_layer_kernel, head=head)
    return pl.pallas_call(
        kernel,
        out_shape=jax.ShapeDtypeStruct((B, L, D), x.dtype),
        grid=grid,
        in_specs=[
            pl.BlockSpec((bt, L, D), lambda b: (b, 0, 0)),   # x (batch tile)
            pl.BlockSpec((bt, L, L), lambda b: (b, 0, 0)),   # mask (batch tile)
            full_spec((D, 3 * D)),                           # fused W_QKV (in,out)
            full_spec((D, D)),                               # W_O (in,out)
            full_spec((D, d_ff)),                            # fc1 weight (in,out)
            full_spec((1, d_ff)),                            # fc1 bias
            full_spec((d_ff, D)),                            # fc2 weight (in,out)
            full_spec((1, D)),                               # fc2 bias
        ],
        out_specs=pl.BlockSpec((bt, L, D), lambda b: (b, 0, 0)),
        compiler_params=pltpu.CompilerParams(
            dimension_semantics=("parallel",)),
    )(x, mask_i32, wqkv, wo_b, w1_b, b1_2d, w2_b, b2_2d)


def reference(x, mask, params, *, head):
    """Plain-JAX f32 reference mirroring the PyTorch forward (max_k=-1 path)."""
    wq, wk, wv, wo, w1, b1, w2, b2 = params
    B, L, D = x.shape
    d_k = D // head
    q = (x @ wq).reshape(B, L, head, d_k).transpose(0, 2, 1, 3)
    k = (x @ wk).reshape(B, L, head, d_k).transpose(0, 2, 1, 3)
    v = (x @ wv).reshape(B, L, head, d_k).transpose(0, 2, 1, 3)
    scores = jnp.einsum('bhqd,bhkd->bhqk', q, k) / math.sqrt(d_k)
    scores = jnp.where(mask[:, None, :, :] != 0, -1e9, scores)
    attn = jax.nn.softmax(scores, axis=-1)
    ctx = jnp.einsum('bhqk,bhkd->bhqd', attn, v).transpose(0, 2, 1, 3).reshape(B, L, D)
    y = ctx @ wo + x
    mu = y.mean(-1, keepdims=True)
    var = ((y - mu) ** 2).mean(-1, keepdims=True)
    yn = (y - mu) / jnp.sqrt(var + 1e-5)
    h1 = yn @ w1 + b1
    g = h1 * 0.5 * (1.0 + erf(h1 / math.sqrt(2.0)))
    return g @ w2 + b2


if __name__ == "__main__":
    B, L, D, H = 2, 8, 32, 4
    d_ff = 4 * D

    key = jax.random.PRNGKey(0)
    ks = jax.random.split(key, 10)
    scale = 0.05
    wq = scale * jax.random.normal(ks[0], (D, D), jnp.float32)   # stored as (in, out)
    wk = scale * jax.random.normal(ks[1], (D, D), jnp.float32)
    wv = scale * jax.random.normal(ks[2], (D, D), jnp.float32)
    wo = scale * jax.random.normal(ks[3], (D, D), jnp.float32)
    w1 = scale * jax.random.normal(ks[4], (D, d_ff), jnp.float32)
    b1 = scale * jax.random.normal(ks[5], (d_ff,), jnp.float32)
    w2 = scale * jax.random.normal(ks[6], (d_ff, D), jnp.float32)
    b2 = scale * jax.random.normal(ks[7], (D,), jnp.float32)
    params = (wq, wk, wv, wo, w1, b1, w2, b2)

    x = jax.random.normal(ks[8], (B, L, D), jnp.float32)

    # padding-style self-attention mask (nonzero == masked), like BERT pad mask
    lengths = jnp.array([L, L - 2], jnp.int32)
    pos = jnp.arange(L)
    pad = pos[None, :] >= lengths[:, None]                       # (B, L)
    mask = jnp.broadcast_to(pad[:, None, :], (B, L, L)).astype(jnp.int32)

    out = encoder_layer(x, mask, params, head=H)
    out = jax.block_until_ready(out)

    ref = reference(x, mask, params, head=H)
    assert out.shape == (B, L, D)
    assert bool(jnp.all(jnp.isfinite(out)))
    assert bool(jnp.max(jnp.abs(out - ref)) < 5e-2), "mismatch vs reference"

    print("KERNEL_OK")
</pallas_src>

<mosaic_0001>
module attributes {stable_mosaic.version = 11 : i64} {
  func.func @_encoder_layer_kernel(%arg0: i32, %arg1: memref<1x8x32xf32, #tpu.memory_space<vmem>>, %arg2: memref<1x8x8xi32, #tpu.memory_space<vmem>>, %arg3: memref<32x96xbf16, #tpu.memory_space<vmem>>, %arg4: memref<32x32xbf16, #tpu.memory_space<vmem>>, %arg5: memref<32x128xbf16, #tpu.memory_space<vmem>>, %arg6: memref<1x128xf32, #tpu.memory_space<vmem>>, %arg7: memref<128x32xbf16, #tpu.memory_space<vmem>>, %arg8: memref<1x32xf32, #tpu.memory_space<vmem>>, %arg9: memref<1x8x32xf32, #tpu.memory_space<vmem>>) attributes {dimension_semantics = [#tpu.dimension_semantics<parallel>], iteration_bounds = array<i64: 2>, scalar_prefetch = 0 : i64, scratch_operands = 0 : i64, tpu.core_type = #tpu.core_type<tc>, window_params = [{transform_indices = @transform_0, window_bounds = array<i64: 1, 8, 32>}, {transform_indices = @transform_1, window_bounds = array<i64: 1, 8, 8>}, {pipeline_mode = #tpu.pipeline_mode<synchronous>, transform_indices = @transform_2, window_bounds = array<i64: 32, 96>}, {pipeline_mode = #tpu.pipeline_mode<synchronous>, transform_indices = @transform_3, window_bounds = array<i64: 32, 32>}, {pipeline_mode = #tpu.pipeline_mode<synchronous>, transform_indices = @transform_4, window_bounds = array<i64: 32, 128>}, {pipeline_mode = #tpu.pipeline_mode<synchronous>, transform_indices = @transform_5, window_bounds = array<i64: 1, 128>}, {pipeline_mode = #tpu.pipeline_mode<synchronous>, transform_indices = @transform_6, window_bounds = array<i64: 128, 32>}, {pipeline_mode = #tpu.pipeline_mode<synchronous>, transform_indices = @transform_7, window_bounds = array<i64: 1, 32>}, {transform_indices = @transform_8, window_bounds = array<i64: 1, 8, 32>}]} {
    %c0 = arith.constant 0 : index
    %c0_0 = arith.constant 0 : index
    %c0_1 = arith.constant 0 : index
    %0 = vector.load %arg1[%c0, %c0_0, %c0_1] : memref<1x8x32xf32, #tpu.memory_space<vmem>>, vector<1x8x32xf32>
    %1 = vector.shape_cast %0 : vector<1x8x32xf32> to vector<8x32xf32>
    %2 = arith.truncf %1 : vector<8x32xf32> to vector<8x32xbf16>
    %c0_2 = arith.constant 0 : index
    %c0_3 = arith.constant 0 : index
    %3 = vector.load %arg3[%c0_2, %c0_3] : memref<32x96xbf16, #tpu.memory_space<vmem>>, vector<32x96xbf16>
    %cst = arith.constant dense<0.000000e+00> : vector<8x96xf32>
    %4 = tpu.matmul %2, %3, %cst {dimension_numbers = #tpu.dot_dimension_numbers<[1], [0], [0], [1], [0, 0, 1, 1], [], []>} : vector<8x32xbf16>, vector<32x96xbf16>, vector<8x96xf32> -> vector<8x96xf32>
    %5 = arith.truncf %4 : vector<8x96xf32> to vector<8x96xbf16>
    %6 = vector.shape_cast %5 : vector<8x96xbf16> to vector<1x8x96xbf16>
    %7 = vector.extract_strided_slice %6 {offsets = [0, 0, 0], sizes = [1, 8, 8], strides = [1, 1, 1]} : vector<1x8x96xbf16> to vector<1x8x8xbf16>
    %8 = vector.extract_strided_slice %6 {offsets = [0, 0, 8], sizes = [1, 8, 8], strides = [1, 1, 1]} : vector<1x8x96xbf16> to vector<1x8x8xbf16>
    %9 = vector.extract_strided_slice %6 {offsets = [0, 0, 16], sizes = [1, 8, 8], strides = [1, 1, 1]} : vector<1x8x96xbf16> to vector<1x8x8xbf16>
    %10 = vector.extract_strided_slice %6 {offsets = [0, 0, 24], sizes = [1, 8, 8], strides = [1, 1, 1]} : vector<1x8x96xbf16> to vector<1x8x8xbf16>
    %11 = vector.shape_cast %7 : vector<1x8x8xbf16> to vector<1x1x8x8xbf16>
    %12 = vector.shape_cast %8 : vector<1x8x8xbf16> to vector<1x1x8x8xbf16>
    %13 = vector.shape_cast %9 : vector<1x8x8xbf16> to vector<1x1x8x8xbf16>
    %14 = vector.shape_cast %10 : vector<1x8x8xbf16> to vector<1x1x8x8xbf16>
    %15 = tpu.concatenate %11, %12, %13, %14 in 1 : vector<1x1x8x8xbf16>, vector<1x1x8x8xbf16>, vector<1x1x8x8xbf16>, vector<1x1x8x8xbf16> -> vector<1x4x8x8xbf16>
    %16 = vector.shape_cast %15 : vector<1x4x8x8xbf16> to vector<4x8x8xbf16>
    %17 = vector.extract_strided_slice %6 {offsets = [0, 0, 32], sizes = [1, 8, 8], strides = [1, 1, 1]} : vector<1x8x96xbf16> to vector<1x8x8xbf16>
    %18 = vector.extract_strided_slice %6 {offsets = [0, 0, 40], sizes = [1, 8, 8], strides = [1, 1, 1]} : vector<1x8x96xbf16> to vector<1x8x8xbf16>
    %19 = vector.extract_strided_slice %6 {offsets = [0, 0, 48], sizes = [1, 8, 8], strides = [1, 1, 1]} : vector<1x8x96xbf16> to vector<1x8x8xbf16>
    %20 = vector.extract_strided_slice %6 {offsets = [0, 0, 56], sizes = [1, 8, 8], strides = [1, 1, 1]} : vector<1x8x96xbf16> to vector<1x8x8xbf16>
    %21 = vector.shape_cast %17 : vector<1x8x8xbf16> to vector<1x1x8x8xbf16>
    %22 = vector.shape_cast %18 : vector<1x8x8xbf16> to vector<1x1x8x8xbf16>
    %23 = vector.shape_cast %19 : vector<1x8x8xbf16> to vector<1x1x8x8xbf16>
    %24 = vector.shape_cast %20 : vector<1x8x8xbf16> to vector<1x1x8x8xbf16>
    %25 = tpu.concatenate %21, %22, %23, %24 in 1 : vector<1x1x8x8xbf16>, vector<1x1x8x8xbf16>, vector<1x1x8x8xbf16>, vector<1x1x8x8xbf16> -> vector<1x4x8x8xbf16>
    %26 = vector.shape_cast %25 : vector<1x4x8x8xbf16> to vector<4x8x8xbf16>
    %27 = vector.extract_strided_slice %6 {offsets = [0, 0, 64], sizes = [1, 8, 8], strides = [1, 1, 1]} : vector<1x8x96xbf16> to vector<1x8x8xbf16>
    %28 = vector.extract_strided_slice %6 {offsets = [0, 0, 72], sizes = [1, 8, 8], strides = [1, 1, 1]} : vector<1x8x96xbf16> to vector<1x8x8xbf16>
    %29 = vector.extract_strided_slice %6 {offsets = [0, 0, 80], sizes = [1, 8, 8], strides = [1, 1, 1]} : vector<1x8x96xbf16> to vector<1x8x8xbf16>
    %30 = vector.extract_strided_slice %6 {offsets = [0, 0, 88], sizes = [1, 8, 8], strides = [1, 1, 1]} : vector<1x8x96xbf16> to vector<1x8x8xbf16>
    %31 = vector.shape_cast %27 : vector<1x8x8xbf16> to vector<1x1x8x8xbf16>
    %32 = vector.shape_cast %28 : vector<1x8x8xbf16> to vector<1x1x8x8xbf16>
    %33 = vector.shape_cast %29 : vector<1x8x8xbf16> to vector<1x1x8x8xbf16>
    %34 = vector.shape_cast %30 : vector<1x8x8xbf16> to vector<1x1x8x8xbf16>
    %35 = tpu.concatenate %31, %32, %33, %34 in 1 : vector<1x1x8x8xbf16>, vector<1x1x8x8xbf16>, vector<1x1x8x8xbf16>, vector<1x1x8x8xbf16> -> vector<1x4x8x8xbf16>
    %36 = vector.shape_cast %35 : vector<1x4x8x8xbf16> to vector<4x8x8xbf16>
    "tpu.trace_start"() <{level = 10 : i32, message = "bqd,bkd->bqk"}> : () -> ()
    %cst_4 = arith.constant dense<0.000000e+00> : vector<4x8x8xf32>
    %37 = tpu.matmul %16, %26, %cst_4 {dimension_numbers = #tpu.dot_dimension_numbers<[2], [2], [1], [1], [0, 0, 0, 1, 1, 1], [0], [0]>} : vector<4x8x8xbf16>, vector<4x8x8xbf16>, vector<4x8x8xf32> -> vector<4x8x8xf32>
    "tpu.trace_stop"() : () -> ()
    %cst_5 = arith.constant 0.353553385 : f32
    %38 = vector.broadcast %cst_5 : f32 to vector<4x8x8xf32>
    %39 = arith.mulf %37, %38 : vector<4x8x8xf32>
    %c0_6 = arith.constant 0 : index
    %c0_7 = arith.constant 0 : index
    %c0_8 = arith.constant 0 : index
    %40 = vector.load %arg2[%c0_6, %c0_7, %c0_8] : memref<1x8x8xi32, #tpu.memory_space<vmem>>, vector<1x8x8xi32>
    %c0_i32 = arith.constant 0 : i32
    %41 = vector.broadcast %c0_i32 : i32 to vector<1x8x8xi32>
    %42 = arith.cmpi ne, %40, %41 : vector<1x8x8xi32>
    %cst_9 = arith.constant -1.000000e+09 : f32
    %cst_10 = arith.constant 0.000000e+00 : f32
    %43 = vector.broadcast %cst_9 : f32 to vector<1x8x8xf32>
    %44 = vector.broadcast %cst_10 : f32 to vector<1x8x8xf32>
    %45 = arith.select %42, %43, %44 : vector<1x8x8xi1>, vector<1x8x8xf32>
    %46 = vector.shape_cast %45 : vector<1x8x8xf32> to vector<1x1x8x8xf32>
    %47 = vector.shape_cast %46 : vector<1x1x8x8xf32> to vector<1x1x8x8xf32>
    %48 = vector.broadcast %47 : vector<1x1x8x8xf32> to vector<1x4x8x8xf32>
    %49 = vector.shape_cast %48 : vector<1x4x8x8xf32> to vector<4x8x8xf32>
    %50 = arith.addf %39, %49 : vector<4x8x8xf32>
    %cst_11 = arith.constant dense<0xFF800000> : vector<4x8xf32>
    %51 = vector.multi_reduction <maximumf>, %50, %cst_11 [2] : vector<4x8x8xf32> to vector<4x8xf32>
    %52 = vector.shape_cast %51 : vector<4x8xf32> to vector<4x8x1xf32>
    %53 = vector.broadcast %52 : vector<4x8x1xf32> to vector<4x8x8xf32>
    %54 = arith.subf %50, %53 : vector<4x8x8xf32>
    %55 = math.exp %54 : vector<4x8x8xf32>
    %cst_12 = arith.constant dense<0.000000e+00> : vector<4x8xf32>
    %56 = vector.multi_reduction <add>, %55, %cst_12 [2] : vector<4x8x8xf32> to vector<4x8xf32>
    %57 = vector.shape_cast %56 : vector<4x8xf32> to vector<4x8x1xf32>
    %58 = tpu.reciprocal %57 {approx = true} : vector<4x8x1xf32> -> vector<4x8x1xf32>
    %59 = vector.broadcast %58 : vector<4x8x1xf32> to vector<4x8x8xf32>
    %60 = arith.mulf %55, %59 : vector<4x8x8xf32>
    %61 = arith.truncf %60 : vector<4x8x8xf32> to vector<4x8x8xbf16>
    "tpu.trace_start"() <{level = 10 : i32, message = "bqk,bkd->bqd"}> : () -> ()
    %cst_13 = arith.constant dense<0.000000e+00> : vector<4x8x8xf32>
    %62 = tpu.matmul %61, %36, %cst_13 {dimension_numbers = #tpu.dot_dimension_numbers<[2], [1], [1], [2], [0, 0, 0, 1, 1, 2], [0], [0]>} : vector<4x8x8xbf16>, vector<4x8x8xbf16>, vector<4x8x8xf32> -> vector<4x8x8xf32>
    "tpu.trace_stop"() : () -> ()
    %63 = vector.shape_cast %62 : vector<4x8x8xf32> to vector<1x4x8x8xf32>
    %64 = vector.extract_strided_slice %63 {offsets = [0, 0, 0, 0], sizes = [1, 1, 8, 8], strides = [1, 1, 1, 1]} : vector<1x4x8x8xf32> to vector<1x1x8x8xf32>
    %65 = vector.shape_cast %64 : vector<1x1x8x8xf32> to vector<1x8x8xf32>
    %66 = vector.shape_cast %65 : vector<1x8x8xf32> to vector<8x8xf32>
    %67 = vector.extract_strided_slice %63 {offsets = [0, 1, 0, 0], sizes = [1, 1, 8, 8], strides = [1, 1, 1, 1]} : vector<1x4x8x8xf32> to vector<1x1x8x8xf32>
    %68 = vector.shape_cast %67 : vector<1x1x8x8xf32> to vector<1x8x8xf32>
    %69 = vector.shape_cast %68 : vector<1x8x8xf32> to vector<8x8xf32>
    %70 = vector.extract_strided_slice %63 {offsets = [0, 2, 0, 0], sizes = [1, 1, 8, 8], strides = [1, 1, 1, 1]} : vector<1x4x8x8xf32> to vector<1x1x8x8xf32>
    %71 = vector.shape_cast %70 : vector<1x1x8x8xf32> to vector<1x8x8xf32>
    %72 = vector.shape_cast %71 : vector<1x8x8xf32> to vector<8x8xf32>
    %73 = vector.extract_strided_slice %63 {offsets = [0, 3, 0, 0], sizes = [1, 1, 8, 8], strides = [1, 1, 1, 1]} : vector<1x4x8x8xf32> to vector<1x1x8x8xf32>
    %74 = vector.shape_cast %73 : vector<1x1x8x8xf32> to vector<1x8x8xf32>
    %75 = vector.shape_cast %74 : vector<1x8x8xf32> to vector<8x8xf32>
    %76 = tpu.concatenate %66, %69, %72, %75 in 1 : vector<8x8xf32>, vector<8x8xf32>, vector<8x8xf32>, vector<8x8xf32> -> vector<8x32xf32>
    %77 = arith.truncf %76 : vector<8x32xf32> to vector<8x32xbf16>
    %c0_14 = arith.constant 0 : index
    %c0_15 = arith.constant 0 : index
    %78 = vector.load %arg4[%c0_14, %c0_15] : memref<32x32xbf16, #tpu.memory_space<vmem>>, vector<32x32xbf16>
    %cst_16 = arith.constant dense<0.000000e+00> : vector<8x32xf32>
    %79 = tpu.matmul %77, %78, %cst_16 {dimension_numbers = #tpu.dot_dimension_numbers<[1], [0], [0], [1], [0, 0, 1, 1], [], []>} : vector<8x32xbf16>, vector<32x32xbf16>, vector<8x32xf32> -> vector<8x32xf32>
    %80 = arith.addf %79, %1 : vector<8x32xf32>
    %cst_17 = arith.constant dense<0.000000e+00> : vector<8xf32>
    %81 = vector.multi_reduction <add>, %80, %cst_17 [1] : vector<8x32xf32> to vector<8xf32>
    %82 = vector.shape_cast %81 : vector<8xf32> to vector<8x1xf32>
    %cst_18 = arith.constant 3.200000e+01 : f32
    %83 = vector.broadcast %cst_18 : f32 to vector<8x1xf32>
    %84 = arith.divf %82, %83 : vector<8x1xf32>
    %85 = vector.broadcast %84 : vector<8x1xf32> to vector<8x32xf32>
    %86 = arith.subf %80, %85 : vector<8x32xf32>
    %87 = vector.broadcast %84 : vector<8x1xf32> to vector<8x32xf32>
    %88 = arith.subf %80, %87 : vector<8x32xf32>
    %89 = arith.mulf %86, %88 : vector<8x32xf32>
    %cst_19 = arith.constant dense<0.000000e+00> : vector<8xf32>
    %90 = vector.multi_reduction <add>, %89, %cst_19 [1] : vector<8x32xf32> to vector<8xf32>
    %91 = vector.shape_cast %90 : vector<8xf32> to vector<8x1xf32>
    %cst_20 = arith.constant 3.200000e+01 : f32
    %92 = vector.broadcast %cst_20 : f32 to vector<8x1xf32>
    %93 = arith.divf %91, %92 : vector<8x1xf32>
    %94 = vector.broadcast %84 : vector<8x1xf32> to vector<8x32xf32>
    %95 = arith.subf %80, %94 : vector<8x32xf32>
    %cst_21 = arith.constant 9.99999974E-6 : f32
    %96 = vector.broadcast %cst_21 : f32 to vector<8x1xf32>
    %97 = arith.addf %93, %96 : vector<8x1xf32>
    %98 = math.rsqrt %97 : vector<8x1xf32>
    %99 = vector.broadcast %98 : vector<8x1xf32> to vector<8x32xf32>
    %100 = arith.mulf %95, %99 : vector<8x32xf32>
    %101 = arith.truncf %100 : vector<8x32xf32> to vector<8x32xbf16>
    %c0_22 = arith.constant 0 : index
    %c0_23 = arith.constant 0 : index
    %102 = vector.load %arg5[%c0_22, %c0_23] : memref<32x128xbf16, #tpu.memory_space<vmem>>, vector<32x128xbf16>
    %cst_24 = arith.constant dense<0.000000e+00> : vector<8x128xf32>
    %103 = tpu.matmul %101, %102, %cst_24 {dimension_numbers = #tpu.dot_dimension_numbers<[1], [0], [0], [1], [0, 0, 1, 1], [], []>} : vector<8x32xbf16>, vector<32x128xbf16>, vector<8x128xf32> -> vector<8x128xf32>
    %c0_25 = arith.constant 0 : index
    %c0_26 = arith.constant 0 : index
    %104 = vector.load %arg6[%c0_25, %c0_26] : memref<1x128xf32, #tpu.memory_space<vmem>>, vector<1x128xf32>
    %105 = vector.broadcast %104 : vector<1x128xf32> to vector<8x128xf32>
    %106 = arith.addf %103, %105 : vector<8x128xf32>
    %cst_27 = arith.constant 5.000000e-01 : f32
    %107 = vector.broadcast %cst_27 : f32 to vector<8x128xf32>
    %108 = arith.mulf %106, %107 : vector<8x128xf32>
    %cst_28 = arith.constant 0.707106769 : f32
    %109 = vector.broadcast %cst_28 : f32 to vector<8x128xf32>
    %110 = arith.mulf %106, %109 : vector<8x128xf32>
    %111 = math.erf %110 : vector<8x128xf32>
    %cst_29 = arith.constant 1.000000e+00 : f32
    %112 = vector.broadcast %cst_29 : f32 to vector<8x128xf32>
    %113 = arith.addf %112, %111 : vector<8x128xf32>
    %114 = arith.mulf %108, %113 : vector<8x128xf32>
    %115 = arith.truncf %114 : vector<8x128xf32> to vector<8x128xbf16>
    %c0_30 = arith.constant 0 : index
    %c0_31 = arith.constant 0 : index
    %116 = vector.load %arg7[%c0_30, %c0_31] : memref<128x32xbf16, #tpu.memory_space<vmem>>, vector<128x32xbf16>
    %cst_32 = arith.constant dense<0.000000e+00> : vector<8x32xf32>
    %117 = tpu.matmul %115, %116, %cst_32 {dimension_numbers = #tpu.dot_dimension_numbers<[1], [0], [0], [1], [0, 0, 1, 1], [], []>} : vector<8x128xbf16>, vector<128x32xbf16>, vector<8x32xf32> -> vector<8x32xf32>
    %c0_33 = arith.constant 0 : index
    %c0_34 = arith.constant 0 : index
    %118 = vector.load %arg8[%c0_33, %c0_34] : memref<1x32xf32, #tpu.memory_space<vmem>>, vector<1x32xf32>
    %119 = vector.broadcast %118 : vector<1x32xf32> to vector<8x32xf32>
    %120 = arith.addf %117, %119 : vector<8x32xf32>
    %121 = vector.shape_cast %120 : vector<8x32xf32> to vector<1x8x32xf32>
    %c0_35 = arith.constant 0 : index
    %c0_36 = arith.constant 0 : index
    %c0_37 = arith.constant 0 : index
    %122 = vector.load %arg9[%c0_35, %c0_36, %c0_37] : memref<1x8x32xf32, #tpu.memory_space<vmem>>, vector<1x8x32xf32>
    tpu.vector_store %arg9[%c0_35, %c0_36, %c0_37], %121 {strides = array<i32>} : memref<1x8x32xf32, #tpu.memory_space<vmem>>, vector<1x8x32xf32>,
    return
  }
  func.func @transform_0(%arg0: i32) -> (i32, i32, i32) {
    %c0_i32 = arith.constant 0 : i32
    %c0_i32_0 = arith.constant 0 : i32
    %c0_i32_1 = arith.constant 0 : i32
    return %arg0, %c0_i32, %c0_i32_0 : i32, i32, i32
  }
  func.func @transform_1(%arg0: i32) -> (i32, i32, i32) {
    %c0_i32 = arith.constant 0 : i32
    %c0_i32_0 = arith.constant 0 : i32
    %c0_i32_1 = arith.constant 0 : i32
    return %arg0, %c0_i32, %c0_i32_0 : i32, i32, i32
  }
  func.func @transform_2(%arg0: i32) -> (i32, i32) {
    %c0_i32 = arith.constant 0 : i32
    %c0_i32_0 = arith.constant 0 : i32
    %c0_i32_1 = arith.constant 0 : i32
    return %c0_i32, %c0_i32_0 : i32, i32
  }
  func.func @transform_3(%arg0: i32) -> (i32, i32) {
    %c0_i32 = arith.constant 0 : i32
    %c0_i32_0 = arith.constant 0 : i32
    %c0_i32_1 = arith.constant 0 : i32
    return %c0_i32, %c0_i32_0 : i32, i32
  }
  func.func @transform_4(%arg0: i32) -> (i32, i32) {
    %c0_i32 = arith.constant 0 : i32
    %c0_i32_0 = arith.constant 0 : i32
    %c0_i32_1 = arith.constant 0 : i32
    return %c0_i32, %c0_i32_0 : i32, i32
  }
  func.func @transform_5(%arg0: i32) -> (i32, i32) {
    %c0_i32 = arith.constant 0 : i32
    %c0_i32_0 = arith.constant 0 : i32
    %c0_i32_1 = arith.constant 0 : i32
    return %c0_i32, %c0_i32_0 : i32, i32
  }
  func.func @transform_6(%arg0: i32) -> (i32, i32) {
    %c0_i32 = arith.constant 0 : i32
    %c0_i32_0 = arith.constant 0 : i32
    %c0_i32_1 = arith.constant 0 : i32
    return %c0_i32, %c0_i32_0 : i32, i32
  }
  func.func @transform_7(%arg0: i32) -> (i32, i32) {
    %c0_i32 = arith.constant 0 : i32
    %c0_i32_0 = arith.constant 0 : i32
    %c0_i32_1 = arith.constant 0 : i32
    return %c0_i32, %c0_i32_0 : i32, i32
  }
  func.func @transform_8(%arg0: i32) -> (i32, i32, i32) {
    %c0_i32 = arith.constant 0 : i32
    %c0_i32_0 = arith.constant 0 : i32
    %c0_i32_1 = arith.constant 0 : i32
    return %arg0, %c0_i32, %c0_i32_0 : i32, i32, i32
  }
}

</mosaic_0001>

<llo_original>
// kernel: tpu_custom_call.1
$region0: #{tpu_custom_call.1}
  #allocation0 [shape = 'u32[]', space=smem, size = 0x4, offset = 0x4, fixed_abs, tag = 'smem constant byte address 0x4 - core index']
  #allocation1 [shape = 'u32[144,128]{1,0:T(1,128)}', space=vmem, size = 0x12000, scoped, tag = 'internal scratch']
  %s0 = inlined_call_operand.vmem [shape: f32[2,8,32], index: 0, kind: input, shape index: {}]
  %s1 = inlined_call_operand.vmem [shape: s32[2,8,8], index: 1, kind: input, shape index: {}]
  %s2 = inlined_call_operand.vmem [shape: bf16[32,96], index: 2, kind: input, shape index: {}]
  %s3 = inlined_call_operand.vmem [shape: bf16[32,32], index: 3, kind: input, shape index: {}]
  %s4 = inlined_call_operand.vmem [shape: bf16[32,128], index: 4, kind: input, shape index: {}]
  %s5 = inlined_call_operand.vmem [shape: f32[1,128], index: 5, kind: input, shape index: {}]
  %s6 = inlined_call_operand.vmem [shape: bf16[128,32], index: 6, kind: input, shape index: {}]
  %s7 = inlined_call_operand.vmem [shape: f32[1,32], index: 7, kind: input, shape index: {}]
  %s8 = inlined_call_operand.hbm [shape: f32[2,8,32], index: 8, kind: output, shape index: {}]
  %s9 = sld [smem:[#allocation0]]
  $region65: #{tpu_custom_call.1} parent=0
    _
  %s11 = ssub.s32 1, %s9
  %s12 = scalar_select 0, %s11, %s9
  $region1: #{tpu_custom_call.1} parent=0
    #allocation2 [shape = 'u8[8192]{0}', space=vmem, size = 0x2000, scoped, tag = 'output window, operand 0']
    #allocation3 [shape = 's32[2]{0}', space=sflag, size = 0x8, scoped, tag = 'scoped memory for tpu_custom_call.1']
    %13 = vsyncpa [#allocation3], 0
    %s14 = scalar_lea.sflag [#allocation3], 1
    %15 = vsyncpa %s14, 0
    loop: start=0, step=1, limit=4
    $region2: #{tpu_custom_call.1} parent=1 // loop_pre_header
      _
    $region3: #{tpu_custom_call.1} parent=1 // loop_header
      %s17 = sphi 0, %s21
      %p18 = scmp.ge.s32.totalorder %s17, 4
      %s27 = sphi 0, %s29
      %s30 = sphi 0, %s27
      %s31 = sphi 0, %s30
      %s47 = sphi 0, %s31
      %s53 = sphi 0, %s55
      %s56 = sphi 0, %s53
      %s57 = sphi 0, %s56
      %s73 = sphi 0, %s57
      %s77 = sphi 0, %s77
      %s79 = sphi 0, %s77
      %s80 = sphi 0, %s79
      %s94 = sphi 0, %s80
      %s98 = sphi 0, %s98
      %s100 = sphi 0, %s98
      %s101 = sphi 0, %s100
      %s115 = sphi 0, %s101
      %s119 = sphi 0, %s119
      %s121 = sphi 0, %s119
      %s122 = sphi 0, %s121
      %s136 = sphi 0, %s122
      %s140 = sphi 0, %s140
      %s142 = sphi 0, %s140
      %s143 = sphi 0, %s142
      %s157 = sphi 0, %s143
      %s161 = sphi 0, %s161
      %s163 = sphi 0, %s161
      %s164 = sphi 0, %s163
      %s178 = sphi 0, %s164
      %s182 = sphi 0, %s182
      %s184 = sphi 0, %s182
      %s185 = sphi 0, %s184
      %s199 = sphi 0, %s185
      %s205 = sphi 0, %s207
      %s208 = sphi 0, %s205
      %s209 = sphi 0, %s208
      %s225 = sphi 0, %s209
    $region4: #{tpu_custom_call.1} parent=1 // loop_header_branch
      %20 = sbr.rel (%p18) target = $region8
    $region5: #{tpu_custom_call.1} parent=1 // loop_body
      %s22 = ssub.s32 %s17, 1
      %s23 = ssub.s32 %s17, 2
      %s24 = sadd.s32 %s17, 1
      %s25 = ssub.s32 %s17, %s24
      %p26 = scmp.eq.s32.totalorder %s25, 0
      %s28 = sadd.s32 %s27, 1
      %s29 = scalar_select %p26, %s27, %s28
      %p32 = pneg %p26
      %p33 = scmp.eq.s32.totalorder %s17, 1
      %p34 = por %p32, %p33
      %p35 = scmp.ne.s32.totalorder %s27, %s30
      %p36 = scmp.eq.s32.totalorder %s17, 0
      %p37 = por %p35, %p36
      %p38 = scmp.ne.s32.totalorder %s27, %s30
      %p39 = scmp.eq.s32.totalorder %s22, 1
      %p40 = por %p38, %p39
      %p41 = scmp.ne.s32.totalorder %s30, %s31
      %p42 = scmp.eq.s32.totalorder %s22, 0
      %p43 = por %p41, %p42
      %p44 = scmp.ne.s32.totalorder %s30, %s31
      %p45 = scmp.eq.s32.totalorder %s23, 1
      %p46 = por %p44, %p45
      %p48 = scmp.ne.s32.totalorder %s31, %s47
      %p49 = scmp.eq.s32.totalorder %s23, 0
      %p50 = por %p48, %p49
      %s51 = ssub.s32 %s17, %s24
      %p52 = scmp.eq.s32.totalorder %s51, 0
      %s54 = sadd.s32 %s53, 1
      %s55 = scalar_select %p52, %s53, %s54
      %p58 = pneg %p52
      %p59 = scmp.eq.s32.totalorder %s17, 1
      %p60 = por %p58, %p59
      %p61 = scmp.ne.s32.totalorder %s53, %s56
      %p62 = scmp.eq.s32.totalorder %s17, 0
      %p63 = por %p61, %p62
      %p64 = scmp.ne.s32.totalorder %s53, %s56
      %p65 = scmp.eq.s32.totalorder %s22, 1
      %p66 = por %p64, %p65
      %p67 = scmp.ne.s32.totalorder %s56, %s57
      %p68 = scmp.eq.s32.totalorder %s22, 0
      %p69 = por %p67, %p68
      %p70 = scmp.ne.s32.totalorder %s56, %s57
      %p71 = scmp.eq.s32.totalorder %s23, 1
      %p72 = por %p70, %p71
      %p74 = scmp.ne.s32.totalorder %s57, %s73
      %p75 = scmp.eq.s32.totalorder %s23, 0
      %p76 = por %p74, %p75
      %s78 = sadd.s32 %s77, 1
      %p81 = scmp.eq.s32.totalorder %s17, 1
      %p82 = scmp.ne.s32.totalorder %s77, %s79
      %p83 = scmp.eq.s32.totalorder %s17, 0
      %p84 = por %p82, %p83
      %p85 = scmp.ne.s32.totalorder %s77, %s79
      %p86 = scmp.eq.s32.totalorder %s22, 1
      %p87 = por %p85, %p86
      %p88 = scmp.ne.s32.totalorder %s79, %s80
      %p89 = scmp.eq.s32.totalorder %s22, 0
      %p90 = por %p88, %p89
      %p91 = scmp.ne.s32.totalorder %s79, %s80
      %p92 = scmp.eq.s32.totalorder %s23, 1
      %p93 = por %p91, %p92
      %p95 = scmp.ne.s32.totalorder %s80, %s94
      %p96 = scmp.eq.s32.totalorder %s23, 0
      %p97 = por %p95, %p96
      %s99 = sadd.s32 %s98, 1
      %p102 = scmp.eq.s32.totalorder %s17, 1
      %p103 = scmp.ne.s32.totalorder %s98, %s100
      %p104 = scmp.eq.s32.totalorder %s17, 0
      %p105 = por %p103, %p104
      %p106 = scmp.ne.s32.totalorder %s98, %s100
      %p107 = scmp.eq.s32.totalorder %s22, 1
      %p108 = por %p106, %p107
      %p109 = scmp.ne.s32.totalorder %s100, %s101
      %p110 = scmp.eq.s32.totalorder %s22, 0
      %p111 = por %p109, %p110
      %p112 = scmp.ne.s32.totalorder %s100, %s101
      %p113 = scmp.eq.s32.totalorder %s23, 1
      %p114 = por %p112, %p113
      %p116 = scmp.ne.s32.totalorder %s101, %s115
      %p117 = scmp.eq.s32.totalorder %s23, 0
      %p118 = por %p116, %p117
      %s120 = sadd.s32 %s119, 1
      %p123 = scmp.eq.s32.totalorder %s17, 1
      %p124 = scmp.ne.s32.totalorder %s119, %s121
      %p125 = scmp.eq.s32.totalorder %s17, 0
      %p126 = por %p124, %p125
      %p127 = scmp.ne.s32.totalorder %s119, %s121
      %p128 = scmp.eq.s32.totalorder %s22, 1
      %p129 = por %p127, %p128
      %p130 = scmp.ne.s32.totalorder %s121, %s122
      %p131 = scmp.eq.s32.totalorder %s22, 0
      %p132 = por %p130, %p131
      %p133 = scmp.ne.s32.totalorder %s121, %s122
      %p134 = scmp.eq.s32.totalorder %s23, 1
      %p135 = por %p133, %p134
      %p137 = scmp.ne.s32.totalorder %s122, %s136
      %p138 = scmp.eq.s32.totalorder %s23, 0
      %p139 = por %p137, %p138
      %s141 = sadd.s32 %s140, 1
      %p144 = scmp.eq.s32.totalorder %s17, 1
      %p145 = scmp.ne.s32.totalorder %s140, %s142
      %p146 = scmp.eq.s32.totalorder %s17, 0
      %p147 = por %p145, %p146
      %p148 = scmp.ne.s32.totalorder %s140, %s142
      %p149 = scmp.eq.s32.totalorder %s22, 1
      %p150 = por %p148, %p149
      %p151 = scmp.ne.s32.totalorder %s142, %s143
      %p152 = scmp.eq.s32.totalorder %s22, 0
      %p153 = por %p151, %p152
      %p154 = scmp.ne.s32.totalorder %s142, %s143
      %p155 = scmp.eq.s32.totalorder %s23, 1
      %p156 = por %p154, %p155
      %p158 = scmp.ne.s32.totalorder %s143, %s157
      %p159 = scmp.eq.s32.totalorder %s23, 0
      %p160 = por %p158, %p159
      %s162 = sadd.s32 %s161, 1
      %p165 = scmp.eq.s32.totalorder %s17, 1
      %p166 = scmp.ne.s32.totalorder %s161, %s163
      %p167 = scmp.eq.s32.totalorder %s17, 0
      %p168 = por %p166, %p167
      %p169 = scmp.ne.s32.totalorder %s161, %s163
      %p170 = scmp.eq.s32.totalorder %s22, 1
      %p171 = por %p169, %p170
      %p172 = scmp.ne.s32.totalorder %s163, %s164
      %p173 = scmp.eq.s32.totalorder %s22, 0
      %p174 = por %p172, %p173
      %p175 = scmp.ne.s32.totalorder %s163, %s164
      %p176 = scmp.eq.s32.totalorder %s23, 1
      %p177 = por %p175, %p176
      %p179 = scmp.ne.s32.totalorder %s164, %s178
      %p180 = scmp.eq.s32.totalorder %s23, 0
      %p181 = por %p179, %p180
      %s183 = sadd.s32 %s182, 1
      %p186 = scmp.eq.s32.totalorder %s17, 1
      %p187 = scmp.ne.s32.totalorder %s182, %s184
      %p188 = scmp.eq.s32.totalorder %s17, 0
      %p189 = por %p187, %p188
      %p190 = scmp.ne.s32.totalorder %s182, %s184
      %p191 = scmp.eq.s32.totalorder %s22, 1
      %p192 = por %p190, %p191
      %p193 = scmp.ne.s32.totalorder %s184, %s185
      %p194 = scmp.eq.s32.totalorder %s22, 0
      %p195 = por %p193, %p194
      %p196 = scmp.ne.s32.totalorder %s184, %s185
      %p197 = scmp.eq.s32.totalorder %s23, 1
      %p198 = por %p196, %p197
      %p200 = scmp.ne.s32.totalorder %s185, %s199
      %p201 = scmp.eq.s32.totalorder %s23, 0
      %p202 = por %p200, %p201
      %s203 = ssub.s32 %s17, %s24
      %p204 = scmp.eq.s32.totalorder %s203, 0
      %s206 = sadd.s32 %s205, 1
      %s207 = scalar_select %p204, %s205, %s206
      %p210 = pneg %p204
      %p211 = scmp.eq.s32.totalorder %s17, 1
      %p212 = por %p210, %p211
      %p213 = scmp.ne.s32.totalorder %s205, %s208
      %p214 = scmp.eq.s32.totalorder %s17, 0
      %p215 = por %p213, %p214
      %p216 = scmp.ne.s32.totalorder %s205, %s208
      %p217 = scmp.eq.s32.totalorder %s22, 1
      %p218 = por %p216, %p217
      %p219 = scmp.ne.s32.totalorder %s208, %s209
      %p220 = scmp.eq.s32.totalorder %s22, 0
      %p221 = por %p219, %p220
      %p222 = scmp.ne.s32.totalorder %s208, %s209
      %p223 = scmp.eq.s32.totalorder %s23, 1
      %p224 = por %p222, %p223
      %p226 = scmp.ne.s32.totalorder %s209, %s225
      %p227 = scmp.eq.s32.totalorder %s23, 0
      %p228 = por %p226, %p227
      %p229 = scmp.le.s32.totalorder 1, %s17
      %p230 = scmp.lt.s32.totalorder %s17, 3
      %p231 = pnand %p229, %p230
      %p232 = pneg %p231
      // Predicated region
      $region9: #{tpu_custom_call.1} parent=5 // pred_check
        _
      $region10: #{tpu_custom_call.1} parent=5 // pred_check_branch
        %234 = sbr.rel (%p231) target = $region12
      $region11: #{tpu_custom_call.1} parent=5 // pred_region
        %s235 = ssub.s32 %s17, 1
        // Predicated region
        $region13: #{tpu_custom_call.1} parent=11 // pred_check
          %p236 = pneg %p90
        $region14: #{tpu_custom_call.1} parent=11 // pred_check_branch
          %238 = sbr.rel (%p236) target = $region16
        $region15: #{tpu_custom_call.1} parent=11 // pred_region
          _
        $region16: #{tpu_custom_call.1} parent=11 // pred_fallthru
          _
        // Predicated region
        $region17: #{tpu_custom_call.1} parent=11 // pred_check
          %p239 = pneg %p111
        $region18: #{tpu_custom_call.1} parent=11 // pred_check_branch
          %241 = sbr.rel (%p239) target = $region20
        $region19: #{tpu_custom_call.1} parent=11 // pred_region
          _
        $region20: #{tpu_custom_call.1} parent=11 // pred_fallthru
          _
        // Predicated region
        $region21: #{tpu_custom_call.1} parent=11 // pred_check
          %p242 = pneg %p132
        $region22: #{tpu_custom_call.1} parent=11 // pred_check_branch
          %244 = sbr.rel (%p242) target = $region24
        $region23: #{tpu_custom_call.1} parent=11 // pred_region
          _
        $region24: #{tpu_custom_call.1} parent=11 // pred_fallthru
          _
        // Predicated region
        $region25: #{tpu_custom_call.1} parent=11 // pred_check
          %p245 = pneg %p153
        $region26: #{tpu_custom_call.1} parent=11 // pred_check_branch
          %247 = sbr.rel (%p245) target = $region28
        $region27: #{tpu_custom_call.1} parent=11 // pred_region
          _
        $region28: #{tpu_custom_call.1} parent=11 // pred_fallthru
          _
        // Predicated region
        $region29: #{tpu_custom_call.1} parent=11 // pred_check
          %p248 = pneg %p174
        $region30: #{tpu_custom_call.1} parent=11 // pred_check_branch
          %250 = sbr.rel (%p248) target = $region32
        $region31: #{tpu_custom_call.1} parent=11 // pred_region
          _
        $region32: #{tpu_custom_call.1} parent=11 // pred_fallthru
          _
        // Predicated region
        $region33: #{tpu_custom_call.1} parent=11 // pred_check
          %p251 = pneg %p195
        $region34: #{tpu_custom_call.1} parent=11 // pred_check_branch
          %253 = sbr.rel (%p251) target = $region36
        $region35: #{tpu_custom_call.1} parent=11 // pred_region
          _
        $region36: #{tpu_custom_call.1} parent=11 // pred_fallthru
          _
      $region12: #{tpu_custom_call.1} parent=5 // pred_fallthru
        _
      %p254 = scmp.lt.s32.totalorder %s17, 2
      // Predicated region
      $region37: #{tpu_custom_call.1} parent=5 // pred_check
        %p255 = pneg %p254
      $region38: #{tpu_custom_call.1} parent=5 // pred_check_branch
        %257 = sbr.rel (%p255) target = $region40
      $region39: #{tpu_custom_call.1} parent=5 // pred_region
        // Predicated region
        $region41: #{tpu_custom_call.1} parent=39 // pred_check
          %p258 = pneg %p37
        $region42: #{tpu_custom_call.1} parent=39 // pred_check_branch
          %260 = sbr.rel (%p258) target = $region44
        $region43: #{tpu_custom_call.1} parent=39 // pred_region
          %p261 = scmp.lt.s32.totalorder %s17, 1
          %s262 = scalar_select %p261, %s17, 1
          %s263 = smul.addr %s262, 8
          %s264 = scalar_lea.vmem %s0, %s263
        $region44: #{tpu_custom_call.1} parent=39 // pred_fallthru
          _
        // Predicated region
        $region45: #{tpu_custom_call.1} parent=39 // pred_check
          %p265 = pneg %p63
        $region46: #{tpu_custom_call.1} parent=39 // pred_check_branch
          %267 = sbr.rel (%p265) target = $region48
        $region47: #{tpu_custom_call.1} parent=39 // pred_region
          %p268 = scmp.lt.s32.totalorder %s17, 1
          %s269 = scalar_select %p268, %s17, 1
          %s270 = smul.addr %s269, 8
          %s271 = scalar_lea.vmem %s1, %s270
        $region48: #{tpu_custom_call.1} parent=39 // pred_fallthru
          _
      $region40: #{tpu_custom_call.1} parent=5 // pred_fallthru
        _
      %p272 = scmp.le.s32.totalorder 1, %s17
      %p273 = scmp.lt.s32.totalorder %s17, 3
      %p274 = pnand %p272, %p273
      %p275 = pneg %p274
      // Predicated region
      $region49: #{tpu_custom_call.1} parent=5 // pred_check
        _
      $region50: #{tpu_custom_call.1} parent=5 // pred_check_branch
        %277 = sbr.rel (%p274) target = $region52
      $region51: #{tpu_custom_call.1} parent=5 // pred_region
        %s278 = ssub.s32 %s17, 1
        %p279 = scmp.lt.s32.totalorder %s22, 1
        %s280 = scalar_select %p279, %s22, 1
        %s281 = smul.addr %s280, 8
        %s282 = scalar_lea.vmem %s0, %s281
        %p283 = pneg %p43
        %p284 = pneg %p40
        %p285 = scmp.lt.s32.totalorder %s22, 1
        %s286 = scalar_select %p285, %s22, 1
        %s287 = smul.addr %s286, 8
        %s288 = scalar_lea.vmem %s1, %s287
        %p289 = pneg %p69
        %p290 = pneg %p66
        %p291 = pneg %p90
        %p292 = pneg %p87
        %p293 = pneg %p111
        %p294 = pneg %p108
        %p295 = pneg %p132
        %p296 = pneg %p129
        %p297 = pneg %p153
        %p298 = pneg %p150
        %p299 = pneg %p174
        %p300 = pneg %p171
        %p301 = pneg %p195
        %p302 = pneg %p192
        %p303 = pneg %p221
        %p304 = pneg %p218
        %s305 = sand.u32 %s208, 1
        %s306 = scalar_lea.sflag [#allocation3], %s305
        %s307 = sand.u32 %s208, 1
        %s308 = smul.addr %s307, 8
        %s309 = scalar_lea.vmem [#allocation2], %s308
        %p310 = scmp.lt.s32.totalorder %s22, 1
        %s311 = scalar_select %p310, %s22, 1
        %s312 = smul.addr %s311, 8
        %s313 = scalar_lea.vmem %s0, %s312
        %p314 = scmp.lt.s32.totalorder %s22, 1
        %s315 = scalar_select %p314, %s22, 1
        %s316 = smul.addr %s315, 8
        %s317 = scalar_lea.vmem %s1, %s316
        %v319 = vld [vmem:[%s313] sm:$0xff]
        %v320 = vpack.c.bf16 %v319, %v319
        %v321 = vld [vmem:[%s2] sm:$0xf]
        %v322 = vld [vmem:[%s2 + $0x4] sm:$0xf]
        %v323 = vld [vmem:[%s2 + $0x8] sm:$0xf]
        %v324 = vld [vmem:[%s2 + $0xc] sm:$0xf]
        %v329 = vunpack.c.l.b16 %v321
        %v330 = vunpack.c.l.b16 %v322
        %v331 = vunpack.c.l.b16 %v323
        %v332 = vunpack.c.l.b16 %v324
        %v333 = vpack.c.b16 %v330, %v329
        %v334 = vpack.c.b16 %v332, %v331
        %vm337 = vcmask 261120
        %v339 = vsel %vm337, %v320, 0
        %341 = vmatprep.subr.bf16.mxu0 0
        %342 = vmatpush1.bf16.msra.mxu0 %v333
        %343 = vmatprep.subr.bf16.mxu0 0
        %344 = vmatpush1.bf16.msra.mxu0 %v334
        %345 = vmatprep.subr.bf16.mxu0 0
        %346 = vmatpush1.bf16.msra.mxu0 0
        %347 = vmatprep.subr.bf16.mxu0 0
        %348 = vmatpush1.bf16.msra.mxu0 0
        %349 = vmatprep.subr.bf16.mxu0 0
        %350 = vmatpush1.bf16.msra.mxu0 0
        %351 = vmatprep.subr.bf16.mxu0 0
        %352 = vmatpush1.bf16.msra.mxu0 0
        %353 = vmatprep.subr.bf16.mxu0 0
        %354 = vmatpush1.bf16.msra.mxu0 0
        %355 = vmatprep.subr.bf16.mxu0 0
        %356 = vmatpush1.bf16.msra.mxu0 0
        %357 = vmatprep.subr.bf16.mxu0 0
        %358 = vmatpush1.bf16.msra.mxu0 0
        %359 = vmatprep.subr.bf16.mxu0 0
        %360 = vmatpush1.bf16.msra.mxu0 0
        %361 = vmatprep.subr.bf16.mxu0 0
        %362 = vmatpush1.bf16.msra.mxu0 0
        %363 = vmatprep.subr.bf16.mxu0 0
        %364 = vmatpush1.bf16.msra.mxu0 0
        %365 = vmatprep.subr.bf16.mxu0 0
        %366 = vmatpush1.bf16.msra.mxu0 0
        %367 = vmatprep.subr.bf16.mxu0 0
        %368 = vmatpush1.bf16.msra.mxu0 0
        %369 = vmatprep.subr.bf16.mxu0 0
        %370 = vmatpush1.bf16.msra.mxu0 0
        %371 = vmatprep.subr.bf16.mxu0 0
        %372 = vmatpush1.bf16.msra.mxu0 0
        %373 = vmatprep.mubr.bf16.mxu0 0
        %374 = vmatmul.mubr.bf16.gmra.mrb[0].mxu0 %v339
        %v375 = vpop.f32.mrb[0].mxu0
        %v376 = vadd.f32 0.0, %v375
        %v377 = vpop.f32.mrb[0].mxu0
        %v378 = vpop.f32.mrb[0].mxu0
        %v379 = vpop.f32.mrb[0].mxu0
        %380 = vdwg.mxu0
        %v381 = vpack.c.bf16 %v376, %v376
        %383 = vrot.lane.b32.xlu0 %v381, 120
        %v384 = vpop.permute.xlu0 %383
        %385 = vrot.lane.b32.xlu0 %v381, 112
        %v386 = vpop.permute.xlu0 %385
        %387 = vrot.lane.b32.xlu0 %v381, 104
        %v388 = vpop.permute.xlu0 %387
        %389 = vrot.lane.b32.xlu0 %v381, 96
        %v390 = vpop.permute.xlu0 %389
        %vm391 = vcmask 64512
        %v393 = vsel %vm391, %v381, 0
        %v396 = vsel %vm391, %v390, 0
        %398 = vmatprep.subr.bf16.mxu0 0
        %399 = vmatpush1.bf16.xpose.msra.mxu0 %v396
        %400 = vmatprep.subr.bf16.mxu0 0
        %401 = vmatpush1.bf16.xpose.msra.mxu0 0
        %402 = vmatprep.subr.bf16.mxu0 0
        %403 = vmatpush1.bf16.xpose.msra.mxu0 0
        %404 = vmatprep.subr.bf16.mxu0 0
        %405 = vmatpush1.bf16.xpose.msra.mxu0 0
        %406 = vmatprep.subr.bf16.mxu0 0
        %407 = vmatpush1.bf16.xpose.msra.mxu0 0
        %408 = vmatprep.subr.bf16.mxu0 0
        %409 = vmatpush1.bf16.xpose.msra.mxu0 0
        %410 = vmatprep.subr.bf16.mxu0 0
        %411 = vmatpush1.bf16.xpose.msra.mxu0 0
        %412 = vmatprep.subr.bf16.mxu0 0
        %413 = vmatpush1.bf16.xpose.msra.mxu0 0
        %414 = vmatprep.subr.bf16.mxu0 0
        %415 = vmatpush1.bf16.xpose.msra.mxu0 0
        %416 = vmatprep.subr.bf16.mxu0 0
        %417 = vmatpush1.bf16.xpose.msra.mxu0 0
        %418 = vmatprep.subr.bf16.mxu0 0
        %419 = vmatpush1.bf16.xpose.msra.mxu0 0
        %420 = vmatprep.subr.bf16.mxu0 0
        %421 = vmatpush1.bf16.xpose.msra.mxu0 0
        %422 = vmatprep.subr.bf16.mxu0 0
        %423 = vmatpush1.bf16.xpose.msra.mxu0 0
        %424 = vmatprep.subr.bf16.mxu0 0
        %425 = vmatpush1.bf16.xpose.msra.mxu0 0
        %426 = vmatprep.subr.bf16.mxu0 0
        %427 = vmatpush1.bf16.xpose.msra.mxu0 0
        %428 = vmatprep.subr.bf16.mxu0 0
        %429 = vmatpush1.bf16.xpose.msra.mxu0 0
        %430 = vmatprep.mubr.bf16.mxu0 0
        %431 = vmatmul.mubr.bf16.gmra.mrb[0].mxu0 %v393
        %v432 = vpop.f32.mrb[0].mxu0
        %v433 = vadd.f32 0.0, %v432
        %v434 = vpop.f32.mrb[0].mxu0
        %v435 = vpop.f32.mrb[0].mxu0
        %v436 = vpop.f32.mrb[0].mxu0
        %437 = vdwg.mxu0
        %438 = vrot.lane.b32.xlu0 %v384, 96
        %v439 = vpop.permute.xlu0 %438
        %v441 = vsel %vm391, %v384, 0
        %v444 = vsel %vm391, %v439, 0
        %446 = vmatprep.subr.bf16.mxu0 0
        %447 = vmatpush1.bf16.xpose.msra.mxu0 %v444
        %448 = vmatprep.subr.bf16.mxu0 0
        %449 = vmatpush1.bf16.xpose.msra.mxu0 0
        %450 = vmatprep.subr.bf16.mxu0 0
        %451 = vmatpush1.bf16.xpose.msra.mxu0 0
        %452 = vmatprep.subr.bf16.mxu0 0
        %453 = vmatpush1.bf16.xpose.msra.mxu0 0
        %454 = vmatprep.subr.bf16.mxu0 0
        %455 = vmatpush1.bf16.xpose.msra.mxu0 0
        %456 = vmatprep.subr.bf16.mxu0 0
        %457 = vmatpush1.bf16.xpose.msra.mxu0 0
        %458 = vmatprep.subr.bf16.mxu0 0
        %459 = vmatpush1.bf16.xpose.msra.mxu0 0
        %460 = vmatprep.subr.bf16.mxu0 0
        %461 = vmatpush1.bf16.xpose.msra.mxu0 0
        %462 = vmatprep.subr.bf16.mxu0 0
        %463 = vmatpush1.bf16.xpose.msra.mxu0 0
        %464 = vmatprep.subr.bf16.mxu0 0
        %465 = vmatpush1.bf16.xpose.msra.mxu0 0
        %466 = vmatprep.subr.bf16.mxu0 0
        %467 = vmatpush1.bf16.xpose.msra.mxu0 0
        %468 = vmatprep.subr.bf16.mxu0 0
        %469 = vmatpush1.bf16.xpose.msra.mxu0 0
        %470 = vmatprep.subr.bf16.mxu0 0
        %471 = vmatpush1.bf16.xpose.msra.mxu0 0
        %472 = vmatprep.subr.bf16.mxu0 0
        %473 = vmatpush1.bf16.xpose.msra.mxu0 0
        %474 = vmatprep.subr.bf16.mxu0 0
        %475 = vmatpush1.bf16.xpose.msra.mxu0 0
        %476 = vmatprep.subr.bf16.mxu0 0
        %477 = vmatpush1.bf16.xpose.msra.mxu0 0
        %478 = vmatprep.mubr.bf16.mxu0 0
        %479 = vmatmul.mubr.bf16.gmra.mrb[0].mxu0 %v441
        %v480 = vpop.f32.mrb[0].mxu0
        %v481 = vadd.f32 0.0, %v480
        %v482 = vpop.f32.mrb[0].mxu0
        %v483 = vpop.f32.mrb[0].mxu0
        %v484 = vpop.f32.mrb[0].mxu0
        %485 = vdwg.mxu0
        %486 = vrot.lane.b32.xlu0 %v386, 96
        %v487 = vpop.permute.xlu0 %486
        %v489 = vsel %vm391, %v386, 0
        %v492 = vsel %vm391, %v487, 0
        %494 = vmatprep.subr.bf16.mxu0 0
        %495 = vmatpush1.bf16.xpose.msra.mxu0 %v492
        %496 = vmatprep.subr.bf16.mxu0 0
        %497 = vmatpush1.bf16.xpose.msra.mxu0 0
        %498 = vmatprep.subr.bf16.mxu0 0
        %499 = vmatpush1.bf16.xpose.msra.mxu0 0
        %500 = vmatprep.subr.bf16.mxu0 0
        %501 = vmatpush1.bf16.xpose.msra.mxu0 0
        %502 = vmatprep.subr.bf16.mxu0 0
        %503 = vmatpush1.bf16.xpose.msra.mxu0 0
        %504 = vmatprep.subr.bf16.mxu0 0
        %505 = vmatpush1.bf16.xpose.msra.mxu0 0
        %506 = vmatprep.subr.bf16.mxu0 0
        %507 = vmatpush1.bf16.xpose.msra.mxu0 0
        %508 = vmatprep.subr.bf16.mxu0 0
        %509 = vmatpush1.bf16.xpose.msra.mxu0 0
        %510 = vmatprep.subr.bf16.mxu0 0
        %511 = vmatpush1.bf16.xpose.msra.mxu0 0
        %512 = vmatprep.subr.bf16.mxu0 0
        %513 = vmatpush1.bf16.xpose.msra.mxu0 0
        %514 = vmatprep.subr.bf16.mxu0 0
        %515 = vmatpush1.bf16.xpose.msra.mxu0 0
        %516 = vmatprep.subr.bf16.mxu0 0
        %517 = vmatpush1.bf16.xpose.msra.mxu0 0
        %518 = vmatprep.subr.bf16.mxu0 0
        %519 = vmatpush1.bf16.xpose.msra.mxu0 0
        %520 = vmatprep.subr.bf16.mxu0 0
        %521 = vmatpush1.bf16.xpose.msra.mxu0 0
        %522 = vmatprep.subr.bf16.mxu0 0
        %523 = vmatpush1.bf16.xpose.msra.mxu0 0
        %524 = vmatprep.subr.bf16.mxu0 0
        %525 = vmatpush1.bf16.xpose.msra.mxu0 0
        %526 = vmatprep.mubr.bf16.mxu0 0
        %527 = vmatmul.mubr.bf16.gmra.mrb[0].mxu0 %v489
        %v528 = vpop.f32.mrb[0].mxu0
        %v529 = vadd.f32 0.0, %v528
        %v530 = vpop.f32.mrb[0].mxu0
        %v531 = vpop.f32.mrb[0].mxu0
        %v532 = vpop.f32.mrb[0].mxu0
        %533 = vdwg.mxu0
        %534 = vrot.lane.b32.xlu0 %v388, 96
        %v535 = vpop.permute.xlu0 %534
        %v537 = vsel %vm391, %v388, 0
        %v540 = vsel %vm391, %v535, 0
        %542 = vmatprep.subr.bf16.mxu0 0
        %543 = vmatpush1.bf16.xpose.msra.mxu0 %v540
        %544 = vmatprep.subr.bf16.mxu0 0
        %545 = vmatpush1.bf16.xpose.msra.mxu0 0
        %546 = vmatprep.subr.bf16.mxu0 0
        %547 = vmatpush1.bf16.xpose.msra.mxu0 0
        %548 = vmatprep.subr.bf16.mxu0 0
        %549 = vmatpush1.bf16.xpose.msra.mxu0 0
        %550 = vmatprep.subr.bf16.mxu0 0
        %551 = vmatpush1.bf16.xpose.msra.mxu0 0
        %552 = vmatprep.subr.bf16.mxu0 0
        %553 = vmatpush1.bf16.xpose.msra.mxu0 0
        %554 = vmatprep.subr.bf16.mxu0 0
        %555 = vmatpush1.bf16.xpose.msra.mxu0 0
        %556 = vmatprep.subr.bf16.mxu0 0
        %557 = vmatpush1.bf16.xpose.msra.mxu0 0
        %558 = vmatprep.subr.bf16.mxu0 0
        %559 = vmatpush1.bf16.xpose.msra.mxu0 0
        %560 = vmatprep.subr.bf16.mxu0 0
        %561 = vmatpush1.bf16.xpose.msra.mxu0 0
        %562 = vmatprep.subr.bf16.mxu0 0
        %563 = vmatpush1.bf16.xpose.msra.mxu0 0
        %564 = vmatprep.subr.bf16.mxu0 0
        %565 = vmatpush1.bf16.xpose.msra.mxu0 0
        %566 = vmatprep.subr.bf16.mxu0 0
        %567 = vmatpush1.bf16.xpose.msra.mxu0 0
        %568 = vmatprep.subr.bf16.mxu0 0
        %569 = vmatpush1.bf16.xpose.msra.mxu0 0
        %570 = vmatprep.subr.bf16.mxu0 0
        %571 = vmatpush1.bf16.xpose.msra.mxu0 0
        %572 = vmatprep.subr.bf16.mxu0 0
        %573 = vmatpush1.bf16.xpose.msra.mxu0 0
        %574 = vmatprep.mubr.bf16.mxu0 0
        %575 = vmatmul.mubr.bf16.gmra.mrb[0].mxu0 %v537
        %v576 = vpop.f32.mrb[0].mxu0
        %v577 = vadd.f32 0.0, %v576
        %v578 = vpop.f32.mrb[0].mxu0
        %v579 = vpop.f32.mrb[0].mxu0
        %v580 = vpop.f32.mrb[0].mxu0
        %581 = vdwg.mxu0
        %v582 = vmul.f32 %v433, 0.35355338
        %v583 = vmul.f32 %v481, 0.35355338
        %v584 = vmul.f32 %v529, 0.35355338
        %v585 = vmul.f32 %v577, 0.35355338
        %v586 = vld [vmem:[%s317] sm:$0xff]
        %vm587 = vcmp.ne.s32.totalorder %v586, 0
        %v588 = vsel %vm587, -1e+09, 0.0
        %v589 = vadd.f32 %v582, %v588
        %v590 = vadd.f32 %v583, %v588
        %v591 = vadd.f32 %v584, %v588
        %v592 = vadd.f32 %v585, %v588
        %v593 = vsel %vm391, %v589, -inf
        %594 = vmax.xlane.f32.xlu0 %v593
        %v595 = vpop.xlane.xlu0 %594
        %v596 = vsel %vm391, %v590, -inf
        %597 = vmax.xlane.f32.xlu0 %v596
        %v598 = vpop.xlane.xlu0 %597
        %v599 = vsel %vm391, %v591, -inf
        %600 = vmax.xlane.f32.xlu0 %v599
        %v601 = vpop.xlane.xlu0 %600
        %v602 = vsel %vm391, %v592, -inf
        %603 = vmax.xlane.f32.xlu0 %v602
        %v604 = vpop.xlane.xlu0 %603
        %v605 = vsub.f32 %v589, %v595
        %v606 = vsub.f32 %v590, %v598
        %v607 = vsub.f32 %v591, %v601
        %v608 = vsub.f32 %v592, %v604
        %v609 = vmul.f32 %v605, 1.442695
        %v610 = vpow.pop %v609
        %v611 = vmul.f32 %v606, 1.442695
        %v612 = vpow.pop %v611
        %v613 = vmul.f32 %v607, 1.442695
        %v614 = vpow.pop %v613
        %v615 = vmul.f32 %v608, 1.442695
        %v616 = vpow.pop %v615
        %v617 = vsel %vm391, %v610, 0.0
        %618 = vadd.xlane.f32.xlu0 %v617
        %v619 = vpop.xlane.xlu0 %618
        %v620 = vsel %vm391, %v612, 0.0
        %621 = vadd.xlane.f32.xlu0 %v620
        %v622 = vpop.xlane.xlu0 %621
        %v623 = vsel %vm391, %v614, 0.0
        %624 = vadd.xlane.f32.xlu0 %v623
        %v625 = vpop.xlane.xlu0 %624
        %v626 = vsel %vm391, %v616, 0.0
        %627 = vadd.xlane.f32.xlu0 %v626
        %v628 = vpop.xlane.xlu0 %627
        %v629 = vrcp.pop %v619
        %v630 = vrcp.pop %v622
        %v631 = vrcp.pop %v625
        %v632 = vrcp.pop %v628
        %v633 = vmul.f32 %v610, %v629
        %v634 = vmul.f32 %v612, %v630
        %v635 = vmul.f32 %v614, %v631
        %v636 = vmul.f32 %v616, %v632
        %v637 = vpack.c.bf16 %v633, %v633
        %v638 = vpack.c.bf16 %v634, %v634
        %v639 = vpack.c.bf16 %v635, %v635
        %v640 = vpack.c.bf16 %v636, %v636
        %641 = vrot.lane.b32.xlu0 %v381, 64
        %v642 = vpop.permute.xlu0 %641
        %v644 = vsel %vm391, %v637, 0
        %vm646 = vcmask 1043456
        %v648 = vsel %vm646, %v642, 0
        %650 = vmatprep.subr.bf16.mxu0 0
        %651 = vmatpush1.bf16.msra.mxu0 %v648
        %652 = vmatprep.subr.bf16.mxu0 0
        %653 = vmatpush1.bf16.msra.mxu0 0
        %654 = vmatprep.subr.bf16.mxu0 0
        %655 = vmatpush1.bf16.msra.mxu0 0
        %656 = vmatprep.subr.bf16.mxu0 0
        %657 = vmatpush1.bf16.msra.mxu0 0
        %658 = vmatprep.subr.bf16.mxu0 0
        %659 = vmatpush1.bf16.msra.mxu0 0
        %660 = vmatprep.subr.bf16.mxu0 0
        %661 = vmatpush1.bf16.msra.mxu0 0
        %662 = vmatprep.subr.bf16.mxu0 0
        %663 = vmatpush1.bf16.msra.mxu0 0
        %664 = vmatprep.subr.bf16.mxu0 0
        %665 = vmatpush1.bf16.msra.mxu0 0
        %666 = vmatprep.subr.bf16.mxu0 0
        %667 = vmatpush1.bf16.msra.mxu0 0
        %668 = vmatprep.subr.bf16.mxu0 0
        %669 = vmatpush1.bf16.msra.mxu0 0
        %670 = vmatprep.subr.bf16.mxu0 0
        %671 = vmatpush1.bf16.msra.mxu0 0
        %672 = vmatprep.subr.bf16.mxu0 0
        %673 = vmatpush1.bf16.msra.mxu0 0
        %674 = vmatprep.subr.bf16.mxu0 0
        %675 = vmatpush1.bf16.msra.mxu0 0
        %676 = vmatprep.subr.bf16.mxu0 0
        %677 = vmatpush1.bf16.msra.mxu0 0
        %678 = vmatprep.subr.bf16.mxu0 0
        %679 = vmatpush1.bf16.msra.mxu0 0
        %680 = vmatprep.subr.bf16.mxu0 0
        %681 = vmatpush1.bf16.msra.mxu0 0
        %682 = vmatprep.mubr.bf16.mxu0 0
        %683 = vmatmul.mubr.bf16.gmra.mrb[0].mxu0 %v644
        %v684 = vpop.f32.mrb[0].mxu0
        %v685 = vadd.f32 0.0, %v684
        %v686 = vpop.f32.mrb[0].mxu0
        %v687 = vpop.f32.mrb[0].mxu0
        %v688 = vpop.f32.mrb[0].mxu0
        %689 = vdwg.mxu0
        %690 = vrot.lane.b32.xlu0 %v384, 64
        %v691 = vpop.permute.xlu0 %690
        %v693 = vsel %vm391, %v638, 0
        %v696 = vsel %vm646, %v691, 0
        %698 = vmatprep.subr.bf16.mxu0 0
        %699 = vmatpush1.bf16.msra.mxu0 %v696
        %700 = vmatprep.subr.bf16.mxu0 0
        %701 = vmatpush1.bf16.msra.mxu0 0
        %702 = vmatprep.subr.bf16.mxu0 0
        %703 = vmatpush1.bf16.msra.mxu0 0
        %704 = vmatprep.subr.bf16.mxu0 0
        %705 = vmatpush1.bf16.msra.mxu0 0
        %706 = vmatprep.subr.bf16.mxu0 0
        %707 = vmatpush1.bf16.msra.mxu0 0
        %708 = vmatprep.subr.bf16.mxu0 0
        %709 = vmatpush1.bf16.msra.mxu0 0
        %710 = vmatprep.subr.bf16.mxu0 0
        %711 = vmatpush1.bf16.msra.mxu0 0
        %712 = vmatprep.subr.bf16.mxu0 0
        %713 = vmatpush1.bf16.msra.mxu0 0
        %714 = vmatprep.subr.bf16.mxu0 0
        %715 = vmatpush1.bf16.msra.mxu0 0
        %716 = vmatprep.subr.bf16.mxu0 0
        %717 = vmatpush1.bf16.msra.mxu0 0
        %718 = vmatprep.subr.bf16.mxu0 0
        %719 = vmatpush1.bf16.msra.mxu0 0
        %720 = vmatprep.subr.bf16.mxu0 0
        %721 = vmatpush1.bf16.msra.mxu0 0
        %722 = vmatprep.subr.bf16.mxu0 0
        %723 = vmatpush1.bf16.msra.mxu0 0
        %724 = vmatprep.subr.bf16.mxu0 0
        %725 = vmatpush1.bf16.msra.mxu0 0
        %726 = vmatprep.subr.bf16.mxu0 0
        %727 = vmatpush1.bf16.msra.mxu0 0
        %728 = vmatprep.subr.bf16.mxu0 0
        %729 = vmatpush1.bf16.msra.mxu0 0
        %730 = vmatprep.mubr.bf16.mxu0 0
        %731 = vmatmul.mubr.bf16.gmra.mrb[0].mxu0 %v693
        %v732 = vpop.f32.mrb[0].mxu0
        %v733 = vadd.f32 0.0, %v732
        %v734 = vpop.f32.mrb[0].mxu0
        %v735 = vpop.f32.mrb[0].mxu0
        %v736 = vpop.f32.mrb[0].mxu0
        %737 = vdwg.mxu0
        %738 = vrot.lane.b32.xlu0 %v386, 64
        %v739 = vpop.permute.xlu0 %738
        %v741 = vsel %vm391, %v639, 0
        %v744 = vsel %vm646, %v739, 0
        %746 = vmatprep.subr.bf16.mxu0 0
        %747 = vmatpush1.bf16.msra.mxu0 %v744
        %748 = vmatprep.subr.bf16.mxu0 0
        %749 = vmatpush1.bf16.msra.mxu0 0
        %750 = vmatprep.subr.bf16.mxu0 0
        %751 = vmatpush1.bf16.msra.mxu0 0
        %752 = vmatprep.subr.bf16.mxu0 0
        %753 = vmatpush1.bf16.msra.mxu0 0
        %754 = vmatprep.subr.bf16.mxu0 0
        %755 = vmatpush1.bf16.msra.mxu0 0
        %756 = vmatprep.subr.bf16.mxu0 0
        %757 = vmatpush1.bf16.msra.mxu0 0
        %758 = vmatprep.subr.bf16.mxu0 0
        %759 = vmatpush1.bf16.msra.mxu0 0
        %760 = vmatprep.subr.bf16.mxu0 0
        %761 = vmatpush1.bf16.msra.mxu0 0
        %762 = vmatprep.subr.bf16.mxu0 0
        %763 = vmatpush1.bf16.msra.mxu0 0
        %764 = vmatprep.subr.bf16.mxu0 0
        %765 = vmatpush1.bf16.msra.mxu0 0
        %766 = vmatprep.subr.bf16.mxu0 0
        %767 = vmatpush1.bf16.msra.mxu0 0
        %768 = vmatprep.subr.bf16.mxu0 0
        %769 = vmatpush1.bf16.msra.mxu0 0
        %770 = vmatprep.subr.bf16.mxu0 0
        %771 = vmatpush1.bf16.msra.mxu0 0
        %772 = vmatprep.subr.bf16.mxu0 0
        %773 = vmatpush1.bf16.msra.mxu0 0
        %774 = vmatprep.subr.bf16.mxu0 0
        %775 = vmatpush1.bf16.msra.mxu0 0
        %776 = vmatprep.subr.bf16.mxu0 0
        %777 = vmatpush1.bf16.msra.mxu0 0
        %778 = vmatprep.mubr.bf16.mxu0 0
        %779 = vmatmul.mubr.bf16.gmra.mrb[0].mxu0 %v741
        %v780 = vpop.f32.mrb[0].mxu0
        %v781 = vadd.f32 0.0, %v780
        %v782 = vpop.f32.mrb[0].mxu0
        %v783 = vpop.f32.mrb[0].mxu0
        %v784 = vpop.f32.mrb[0].mxu0
        %785 = vdwg.mxu0
        %786 = vrot.lane.b32.xlu0 %v388, 64
        %v787 = vpop.permute.xlu0 %786
        %v789 = vsel %vm391, %v640, 0
        %v792 = vsel %vm646, %v787, 0
        %794 = vmatprep.subr.bf16.mxu0 0
        %795 = vmatpush1.bf16.msra.mxu0 %v792
        %796 = vmatprep.subr.bf16.mxu0 0
        %797 = vmatpush1.bf16.msra.mxu0 0
        %798 = vmatprep.subr.bf16.mxu0 0
        %799 = vmatpush1.bf16.msra.mxu0 0
        %800 = vmatprep.subr.bf16.mxu0 0
        %801 = vmatpush1.bf16.msra.mxu0 0
        %802 = vmatprep.subr.bf16.mxu0 0
        %803 = vmatpush1.bf16.msra.mxu0 0
        %804 = vmatprep.subr.bf16.mxu0 0
        %805 = vmatpush1.bf16.msra.mxu0 0
        %806 = vmatprep.subr.bf16.mxu0 0
        %807 = vmatpush1.bf16.msra.mxu0 0
        %808 = vmatprep.subr.bf16.mxu0 0
        %809 = vmatpush1.bf16.msra.mxu0 0
        %810 = vmatprep.subr.bf16.mxu0 0
        %811 = vmatpush1.bf16.msra.mxu0 0
        %812 = vmatprep.subr.bf16.mxu0 0
        %813 = vmatpush1.bf16.msra.mxu0 0
        %814 = vmatprep.subr.bf16.mxu0 0
        %815 = vmatpush1.bf16.msra.mxu0 0
        %816 = vmatprep.subr.bf16.mxu0 0
        %817 = vmatpush1.bf16.msra.mxu0 0
        %818 = vmatprep.subr.bf16.mxu0 0
        %819 = vmatpush1.bf16.msra.mxu0 0
        %820 = vmatprep.subr.bf16.mxu0 0
        %821 = vmatpush1.bf16.msra.mxu0 0
        %822 = vmatprep.subr.bf16.mxu0 0
        %823 = vmatpush1.bf16.msra.mxu0 0
        %824 = vmatprep.subr.bf16.mxu0 0
        %825 = vmatpush1.bf16.msra.mxu0 0
        %826 = vmatprep.mubr.bf16.mxu0 0
        %827 = vmatmul.mubr.bf16.gmra.mrb[0].mxu0 %v789
        %v828 = vpop.f32.mrb[0].mxu0
        %v829 = vadd.f32 0.0, %v828
        %v830 = vpop.f32.mrb[0].mxu0
        %v831 = vpop.f32.mrb[0].mxu0
        %v832 = vpop.f32.mrb[0].mxu0
        %833 = vdwg.mxu0
        %835 = vrot.lane.b32.xlu0 %v733, 8
        %v836 = vpop.permute.xlu0 %835
        %839 = vrot.lane.b32.xlu0 %v781, 16
        %v840 = vpop.permute.xlu0 %839
        %843 = vrot.lane.b32.xlu0 %v829, 24
        %v844 = vpop.permute.xlu0 %843
        %v846 = vsel %vm391, %v685, %v836
        %vm847 = vcmask 130048
        %v848 = vsel %vm847, %v846, %v840
        %vm849 = vcmask 195584
        %v850 = vsel %vm849, %v848, %v844
        %v851 = vpack.c.bf16 %v850, %v850
        %v852 = vld [vmem:[%s3] sm:$0xf]
        %v853 = vld [vmem:[%s3 + $0x4] sm:$0xf]
        %v854 = vld [vmem:[%s3 + $0x8] sm:$0xf]
        %v855 = vld [vmem:[%s3 + $0xc] sm:$0xf]
        %v860 = vunpack.c.l.b16 %v852
        %v861 = vunpack.c.l.b16 %v853
        %v862 = vunpack.c.l.b16 %v854
        %v863 = vunpack.c.l.b16 %v855
        %v864 = vpack.c.b16 %v861, %v860
        %v865 = vpack.c.b16 %v863, %v862
        %v869 = vsel %vm337, %v851, 0
        %871 = vmatprep.subr.bf16.mxu0 0
        %872 = vmatpush1.bf16.msra.mxu0 %v864
        %873 = vmatprep.subr.bf16.mxu0 0
        %874 = vmatpush1.bf16.msra.mxu0 %v865
        %875 = vmatprep.subr.bf16.mxu0 0
        %876 = vmatpush1.bf16.msra.mxu0 0
        %877 = vmatprep.subr.bf16.mxu0 0
        %878 = vmatpush1.bf16.msra.mxu0 0
        %879 = vmatprep.subr.bf16.mxu0 0
        %880 = vmatpush1.bf16.msra.mxu0 0
        %881 = vmatprep.subr.bf16.mxu0 0
        %882 = vmatpush1.bf16.msra.mxu0 0
        %883 = vmatprep.subr.bf16.mxu0 0
        %884 = vmatpush1.bf16.msra.mxu0 0
        %885 = vmatprep.subr.bf16.mxu0 0
        %886 = vmatpush1.bf16.msra.mxu0 0
        %887 = vmatprep.subr.bf16.mxu0 0
        %888 = vmatpush1.bf16.msra.mxu0 0
        %889 = vmatprep.subr.bf16.mxu0 0
        %890 = vmatpush1.bf16.msra.mxu0 0
        %891 = vmatprep.subr.bf16.mxu0 0
        %892 = vmatpush1.bf16.msra.mxu0 0
        %893 = vmatprep.subr.bf16.mxu0 0
        %894 = vmatpush1.bf16.msra.mxu0 0
        %895 = vmatprep.subr.bf16.mxu0 0
        %896 = vmatpush1.bf16.msra.mxu0 0
        %897 = vmatprep.subr.bf16.mxu0 0
        %898 = vmatpush1.bf16.msra.mxu0 0
        %899 = vmatprep.subr.bf16.mxu0 0
        %900 = vmatpush1.bf16.msra.mxu0 0
        %901 = vmatprep.subr.bf16.mxu0 0
        %902 = vmatpush1.bf16.msra.mxu0 0
        %903 = vmatprep.mubr.bf16.mxu0 0
        %904 = vmatmul.mubr.bf16.gmra.mrb[0].mxu0 %v869
        %v905 = vpop.f32.mrb[0].mxu0
        %v906 = vadd.f32 %v319, %v905
        %v907 = vpop.f32.mrb[0].mxu0
        %v908 = vpop.f32.mrb[0].mxu0
        %v909 = vpop.f32.mrb[0].mxu0
        %910 = vdwg.mxu0
        %v911 = vsel %vm337, %v906, 0.0
        %912 = vadd.xlane.f32.xlu0 %v911
        %v913 = vpop.xlane.xlu0 %912
        %v914 = vrcp.pop 32.0
        %v915 = vmul.f32 %v913, %v914
        %v916 = vsub.f32 %v906, %v915
        %v917 = vmul.f32 %v916, %v916
        %v918 = vsel %vm337, %v917, 0.0
        %919 = vadd.xlane.f32.xlu0 %v918
        %v920 = vpop.xlane.xlu0 %919
        %v921 = vmul.f32 %v920, %v914
        %v922 = vadd.f32 %v921, 1e-05
        %v923 = vrsqrt.pop %v922
        %v924 = vmul.f32 %v916, %v923
        %v925 = vpack.c.bf16 %v924, %v924
        %v926 = vld [vmem:[%s4] sm:$0xf]
        %v927 = vld [vmem:[%s4 + $0x4] sm:$0xf]
        %v928 = vld [vmem:[%s4 + $0x8] sm:$0xf]
        %v929 = vld [vmem:[%s4 + $0xc] sm:$0xf]
        %v930 = vld [vmem:[%s5] sm:$0x1]
        %v932 = vlaneseq
        %v933 = vshrl.u32 %v932, 7
        %v934 = vsub.s32 0, %v933
        %v935 = vrot.slane %v930, %v934
        %v941 = vunpack.c.l.b16 %v926
        %v942 = vunpack.c.l.b16 %v927
        %v943 = vunpack.c.l.b16 %v928
        %v944 = vunpack.c.l.b16 %v929
        %v945 = vpack.c.b16 %v942, %v941
        %v946 = vpack.c.b16 %v944, %v943
        %v950 = vsel %vm337, %v925, 0
        %952 = vmatprep.subr.bf16.mxu0 0
        %953 = vmatpush1.bf16.msra.mxu0 %v945
        %954 = vmatprep.subr.bf16.mxu0 0
        %955 = vmatpush1.bf16.msra.mxu0 %v946
        %956 = vmatprep.subr.bf16.mxu0 0
        %957 = vmatpush1.bf16.msra.mxu0 0
        %958 = vmatprep.subr.bf16.mxu0 0
        %959 = vmatpush1.bf16.msra.mxu0 0
        %960 = vmatprep.subr.bf16.mxu0 0
        %961 = vmatpush1.bf16.msra.mxu0 0
        %962 = vmatprep.subr.bf16.mxu0 0
        %963 = vmatpush1.bf16.msra.mxu0 0
        %964 = vmatprep.subr.bf16.mxu0 0
        %965 = vmatpush1.bf16.msra.mxu0 0
        %966 = vmatprep.subr.bf16.mxu0 0
        %967 = vmatpush1.bf16.msra.mxu0 0
        %968 = vmatprep.subr.bf16.mxu0 0
        %969 = vmatpush1.bf16.msra.mxu0 0
        %970 = vmatprep.subr.bf16.mxu0 0
        %971 = vmatpush1.bf16.msra.mxu0 0
        %972 = vmatprep.subr.bf16.mxu0 0
        %973 = vmatpush1.bf16.msra.mxu0 0
        %974 = vmatprep.subr.bf16.mxu0 0
        %975 = vmatpush1.bf16.msra.mxu0 0
        %976 = vmatprep.subr.bf16.mxu0 0
        %977 = vmatpush1.bf16.msra.mxu0 0
        %978 = vmatprep.subr.bf16.mxu0 0
        %979 = vmatpush1.bf16.msra.mxu0 0
        %980 = vmatprep.subr.bf16.mxu0 0
        %981 = vmatpush1.bf16.msra.mxu0 0
        %982 = vmatprep.subr.bf16.mxu0 0
        %983 = vmatpush1.bf16.msra.mxu0 0
        %984 = vmatprep.mubr.bf16.mxu0 0
        %985 = vmatmul.mubr.bf16.gmra.mrb[0].mxu0 %v950
        %v986 = vpop.f32.mrb[0].mxu0
        %v987 = vadd.f32 %v935, %v986
        %v988 = vpop.f32.mrb[0].mxu0
        %v989 = vpop.f32.mrb[0].mxu0
        %v990 = vpop.f32.mrb[0].mxu0
        %991 = vdwg.mxu0
        %v992 = vmul.f32 %v987, 0.5
        %v993 = vmul.f32 %v987, 0.70710677
        %v994 = verf.f32.pop %v993
        %v995 = vadd.f32 %v994, 1.0
        %v996 = vmul.f32 %v992, %v995
        %v997 = vpack.c.bf16 %v996, %v996
        %v998 = vld [vmem:[%s6] sm:$0xf]
        %v999 = vld [vmem:[%s6 + $0x4] sm:$0xf]
        %v1000 = vld [vmem:[%s6 + $0x8] sm:$0xf]
        %v1001 = vld [vmem:[%s6 + $0xc] sm:$0xf]
        %v1002 = vld [vmem:[%s6 + $0x10] sm:$0xf]
        %v1003 = vld [vmem:[%s6 + $0x14] sm:$0xf]
        %v1004 = vld [vmem:[%s6 + $0x18] sm:$0xf]
        %v1005 = vld [vmem:[%s6 + $0x1c] sm:$0xf]
        %v1006 = vld [vmem:[%s6 + $0x20] sm:$0xf]
        %v1007 = vld [vmem:[%s6 + $0x24] sm:$0xf]
        %v1008 = vld [vmem:[%s6 + $0x28] sm:$0xf]
        %v1009 = vld [vmem:[%s6 + $0x2c] sm:$0xf]
        %v1010 = vld [vmem:[%s6 + $0x30] sm:$0xf]
        %v1011 = vld [vmem:[%s6 + $0x34] sm:$0xf]
        %v1012 = vld [vmem:[%s6 + $0x38] sm:$0xf]
        %v1013 = vld [vmem:[%s6 + $0x3c] sm:$0xf]
        %v1014 = vld [vmem:[%s7] sm:$0x1]
        %v1016 = vlaneseq
        %v1017 = vshrl.u32 %v1016, 7
        %v1018 = vsub.s32 0, %v1017
        %v1019 = vrot.slane %v1014, %v1018
        %v1037 = vunpack.c.l.b16 %v998
        %v1038 = vunpack.c.l.b16 %v999
        %v1039 = vunpack.c.l.b16 %v1000
        %v1040 = vunpack.c.l.b16 %v1001
        %v1041 = vunpack.c.l.b16 %v1002
        %v1042 = vunpack.c.l.b16 %v1003
        %v1043 = vunpack.c.l.b16 %v1004
        %v1044 = vunpack.c.l.b16 %v1005
        %v1045 = vunpack.c.l.b16 %v1006
        %v1046 = vunpack.c.l.b16 %v1007
        %v1047 = vunpack.c.l.b16 %v1008
        %v1048 = vunpack.c.l.b16 %v1009
        %v1049 = vunpack.c.l.b16 %v1010
        %v1050 = vunpack.c.l.b16 %v1011
        %v1051 = vunpack.c.l.b16 %v1012
        %v1052 = vunpack.c.l.b16 %v1013
        %v1053 = vpack.c.b16 %v1038, %v1037
        %v1054 = vpack.c.b16 %v1040, %v1039
        %v1055 = vpack.c.b16 %v1042, %v1041
        %v1056 = vpack.c.b16 %v1044, %v1043
        %v1057 = vpack.c.b16 %v1046, %v1045
        %v1058 = vpack.c.b16 %v1048, %v1047
        %v1059 = vpack.c.b16 %v1050, %v1049
        %v1060 = vpack.c.b16 %v1052, %v1051
        %1069 = vmatprep.subr.bf16.mxu0 0
        %1070 = vmatpush1.bf16.msra.mxu0 %v1053
        %1071 = vmatprep.subr.bf16.mxu0 0
        %1072 = vmatpush1.bf16.msra.mxu0 %v1054
        %1073 = vmatprep.subr.bf16.mxu0 0
        %1074 = vmatpush1.bf16.msra.mxu0 %v1055
        %1075 = vmatprep.subr.bf16.mxu0 0
        %1076 = vmatpush1.bf16.msra.mxu0 %v1056
        %1077 = vmatprep.subr.bf16.mxu0 0
        %1078 = vmatpush1.bf16.msra.mxu0 %v1057
        %1079 = vmatprep.subr.bf16.mxu0 0
        %1080 = vmatpush1.bf16.msra.mxu0 %v1058
        %1081 = vmatprep.subr.bf16.mxu0 0
        %1082 = vmatpush1.bf16.msra.mxu0 %v1059
        %1083 = vmatprep.subr.bf16.mxu0 0
        %1084 = vmatpush1.bf16.msra.mxu0 %v1060
        %1085 = vmatprep.subr.bf16.mxu0 0
        %1086 = vmatpush1.bf16.msra.mxu0 0
        %1087 = vmatprep.subr.bf16.mxu0 0
        %1088 = vmatpush1.bf16.msra.mxu0 0
        %1089 = vmatprep.subr.bf16.mxu0 0
        %1090 = vmatpush1.bf16.msra.mxu0 0
        %1091 = vmatprep.subr.bf16.mxu0 0
        %1092 = vmatpush1.bf16.msra.mxu0 0
        %1093 = vmatprep.subr.bf16.mxu0 0
        %1094 = vmatpush1.bf16.msra.mxu0 0
        %1095 = vmatprep.subr.bf16.mxu0 0
        %1096 = vmatpush1.bf16.msra.mxu0 0
        %1097 = vmatprep.subr.bf16.mxu0 0
        %1098 = vmatpush1.bf16.msra.mxu0 0
        %1099 = vmatprep.subr.bf16.mxu0 0
        %1100 = vmatpush1.bf16.msra.mxu0 0
        %1101 = vmatprep.mubr.bf16.mxu0 0
        %1102 = vmatmul.mubr.bf16.gmra.mrb[0].mxu0 %v997
        %v1103 = vpop.f32.mrb[0].mxu0
        %v1104 = vadd.f32 %v1019, %v1103
        %v1105 = vpop.f32.mrb[0].mxu0
        %v1106 = vpop.f32.mrb[0].mxu0
        %v1107 = vpop.f32.mrb[0].mxu0
        %1108 = vdwg.mxu0
        %1109 = vst.msk [vmem:[%s309] sm:$0xff] %vm337, %v1104
        %s1110 = sand.u32 %s208, 1
        %s1111 = scalar_lea.sflag [#allocation3], %s1110
        %s1112 = sand.u32 %s208, 1
        %s1113 = smul.addr %s1112, 8
        %s1114 = scalar_lea.vmem [#allocation2], %s1113
        // Predicated region
        $region53: #{tpu_custom_call.1} parent=51 // pred_check
          %p1115 = pneg %p218
        $region54: #{tpu_custom_call.1} parent=51 // pred_check_branch
          %1117 = sbr.rel (%p1115) target = $region56
        $region55: #{tpu_custom_call.1} parent=51 // pred_region
          %s1119 = ssub.s32 128, 128
          %1120 = vsyncadd %s1111, %s1119
          %s1121 = smul.addr %s22, 128
          %s1122 = scalar_lea.hbm %s8, %s1121
          %s1124 = sshll.u32 %s1114, 4
          %s1125 = int_to_ptr.vmem [resolvable:$true] %s1124
          %1127 = dma.vmem_to_hbm [thread:$0]  %s1125, 128, %s1122, %s1111
        $region56: #{tpu_custom_call.1} parent=51 // pred_fallthru
          _
      $region52: #{tpu_custom_call.1} parent=5 // pred_fallthru
        _
      %p1128 = scmp.le.s32.totalorder 2, %s17
      // Predicated region
      $region57: #{tpu_custom_call.1} parent=5 // pred_check
        %p1129 = pneg %p1128
      $region58: #{tpu_custom_call.1} parent=5 // pred_check_branch
        %1131 = sbr.rel (%p1129) target = $region60
      $region59: #{tpu_custom_call.1} parent=5 // pred_region
        %s1132 = ssub.s32 %s17, 2
        // Predicated region
        $region61: #{tpu_custom_call.1} parent=59 // pred_check
          %p1133 = pneg %p224
        $region62: #{tpu_custom_call.1} parent=59 // pred_check_branch
          %1135 = sbr.rel (%p1133) target = $region64
        $region63: #{tpu_custom_call.1} parent=59 // pred_region
          %s1136 = sand.u32 %s209, 1
          %s1137 = scalar_lea.sflag [#allocation3], %s1136
          %s1138 = sand.u32 %s209, 1
          %s1139 = smul.addr %s1138, 8
          %s1140 = scalar_lea.vmem [#allocation2], %s1139
          %1141 = dma.done %s1137, 128
        $region64: #{tpu_custom_call.1} parent=59 // pred_fallthru
          _
      $region60: #{tpu_custom_call.1} parent=5 // pred_fallthru
        _
    $region6: #{tpu_custom_call.1} parent=1 // loop_footer
      %s21 = sadd.s32 1, %s17
    $region7: #{tpu_custom_call.1} parent=1 // loop_footer_branch
      %16 = sbr.rel target = $region3
    $region8: #{tpu_custom_call.1} parent=1 // loop_exit
      _
    %1142 = vsyncpa [#allocation3], 1
    %s1143 = scalar_lea.sflag [#allocation3], 1
    %1144 = vsyncpa %s1143, 1

</llo_original>
